<compile_context>
chip_gen: v7x
topology: tpu7x:2x2x1
jax: 0.10.0
libtpu: 0.0.40
codegen_flags: <defaults>
</compile_context>

<pallas_src>
from functools import partial

import numpy as np
import jax
import jax.numpy as jnp
from jax.experimental import pallas as pl
from jax.experimental.pallas import tpu as pltpu


# ----------------------------------------------------------------------------
# One-time (import-time, float64 numpy) fit of p(u) ~= 0.5*(cos(pi*sqrt(u))+1)
# on u in [0, 1].  The function is entire in u, so a low-degree polynomial
# reaches ~1e-8 absolute error.
# ----------------------------------------------------------------------------
def _fit_envelope_poly(max_abs_err=5e-8, max_degree=10):
    u = np.linspace(0.0, 1.0, 4001)
    g = 0.5 * (np.cos(np.pi * np.sqrt(u)) + 1.0)
    coeffs = None
    for deg in range(5, max_degree + 1):
        c_desc = np.polyfit(u, g, deg)                       # descending powers
        err = float(np.max(np.abs(np.polyval(c_desc, u) - g)))
        coeffs = tuple(float(c) for c in c_desc[::-1])       # ascending in u
        if err <= max_abs_err:
            break
    return coeffs


_ENV_POLY_COEFFS = _fit_envelope_poly()


# ----------------------------------------------------------------------------
# Kernel: elementwise cosine envelope on a lane-dense (tile_rows, lane_width) tile
# ----------------------------------------------------------------------------
def _cosine_envelope_kernel(d_ref, o_ref, *, cutoff, coeffs):
    d = d_ref[...].astype(jnp.float32)                       # (tr, W) lane-dense tile
    # t = |d| / cutoff clipped to the fitted domain [0, 1]; u = t^2.
    # (d is a distance, hence nonnegative in PaiNN; |d| + clip just keep the
    #  polynomial in-domain for stray values -- anything >= cutoff is masked.)
    t = jnp.minimum(jnp.abs(d) * (1.0 / cutoff), 1.0)
    u = t * t
    # Horner evaluation of p(u) ~= 0.5*(cos(pi*t) + 1); coeffs ascending in u.
    p = u * coeffs[-1] + coeffs[-2]
    for c in coeffs[-3::-1]:
        p = p * u + c
    o_ref[...] = jnp.where(d >= cutoff, 0.0, p).astype(o_ref.dtype)


# ----------------------------------------------------------------------------
# Wrapper: arbitrary-shaped d -> lane-dense 2D slab -> pallas_call -> original shape
# ----------------------------------------------------------------------------
def cosine_envelope(d, *, cutoff, lane_width=512, target_block_bytes=4 * 1024 * 1024):
    orig_shape = d.shape
    orig_dtype = d.dtype
    flat = d.reshape(-1)                                     # free (bitcast)
    n = flat.shape[0]
    if n == 0:
        return jnp.zeros(orig_shape, orig_dtype)

    # 1) lane-dense 2D slab.  Pad the flat length to a multiple of lane_width
    #    ONLY when needed (this is the single remaining O(n) copy).  The pad
    #    value is irrelevant -- padded lanes are sliced off below.
    pad = (-n) % lane_width
    if pad:
        flat = jnp.pad(flat, (0, pad), constant_values=float(cutoff))
    rows = flat.shape[0] // lane_width
    x2 = flat.reshape(rows, lane_width)                      # free (bitcast)

    # 2) row tile: multiple of the sublane-packing factor for this dtype,
    #    sized for ~4 MiB blocks, and chosen so the grid has >= 2 steps
    #    whenever possible (v7x megacore).  The ragged last row-tile is
    #    handled by the pl.cdiv grid -- no row padding.
    itemsize = jnp.dtype(orig_dtype).itemsize
    sub = {1: 32, 2: 16}.get(itemsize, 8)
    cap_rows = max(sub, (target_block_bytes // (lane_width * itemsize)) // sub * sub)
    if rows <= sub:
        tile_rows = rows                                     # full-extent sublane dim
    else:
        half_rows = -(-rows // 2)                            # ceil(rows / 2)
        tile_rows = min(cap_rows, -(-half_rows // sub) * sub)
    grid = (pl.cdiv(rows, tile_rows),)

    out2 = pl.pallas_call(
        partial(_cosine_envelope_kernel, cutoff=float(cutoff), coeffs=_ENV_POLY_COEFFS),
        out_shape=jax.ShapeDtypeStruct((rows, lane_width), orig_dtype),
        grid=grid,
        in_specs=[pl.BlockSpec((tile_rows, lane_width), lambda i: (i, 0))],
        out_specs=pl.BlockSpec((tile_rows, lane_width), lambda i: (i, 0)),
        compiler_params=pltpu.CompilerParams(
            dimension_semantics=("parallel",),               # v7x: shard steps over both TCs
            vmem_limit_bytes=32 * 1024 * 1024,               # safe on every generation
        ),
    )(x2)

    # 3) restore the original shape (slice only if we padded).
    out_flat = out2.reshape(-1)
    if pad:
        out_flat = out_flat[:n]
    return out_flat.reshape(orig_shape)


# ----------------------------------------------------------------------------
# Pure-JAX reference (same math as the PyTorch module) for a correctness check
# ----------------------------------------------------------------------------
def cosine_envelope_ref(d, *, cutoff):
    out = 0.5 * (jnp.cos(np.pi * d / cutoff) + 1.0)
    return jnp.where(d >= cutoff, jnp.zeros_like(out), out)


if __name__ == "__main__":
    CUTOFF = 5.0
    key = jax.random.PRNGKey(0)
    k1, k2 = jax.random.split(key)

    # (E, 1) per-edge distances as produced by the PaiNN message block.
    # E = 2000 exercises the ragged (single pad + slice) wrapper path.
    d1 = jax.random.uniform(k1, (2000, 1), minval=0.0, maxval=1.5 * CUTOFF,
                            dtype=jnp.float32)
    # force all branches: zero distance, exactly at cutoff, beyond cutoff
    d1 = d1.at[0, 0].set(0.0)
    d1 = d1.at[1, 0].set(CUTOFF)
    d1 = d1.at[2, 0].set(1.25 * CUTOFF)

    # flat length that is already a multiple of the lane width -> zero-copy
    # wrapper path with a multi-step ("parallel") grid.
    d2 = jax.random.uniform(k2, (8192,), minval=0.0, maxval=1.5 * CUTOFF,
                            dtype=jnp.float32)

    for d in (d1, d2):
        out = jax.block_until_ready(cosine_envelope(d, cutoff=CUTOFF))
        ref = jax.block_until_ready(cosine_envelope_ref(d, cutoff=CUTOFF))
        assert out.shape == d.shape, (out.shape, d.shape)
        assert out.dtype == d.dtype, (out.dtype, d.dtype)
        np.testing.assert_allclose(np.asarray(out), np.asarray(ref),
                                   rtol=1e-5, atol=2e-6)

    print("KERNEL_OK")
</pallas_src>

<mosaic_0001>
module attributes {stable_mosaic.version = 11 : i64} {
  func.func @_cosine_envelope_kernel(%arg0: i32, %arg1: memref<4x512xf32, #tpu.memory_space<vmem>>, %arg2: memref<4x512xf32, #tpu.memory_space<vmem>>) attributes {dimension_semantics = [#tpu.dimension_semantics<parallel>], iteration_bounds = array<i64: 1>, scalar_prefetch = 0 : i64, scratch_operands = 0 : i64, tpu.core_type = #tpu.core_type<tc>, window_params = [{transform_indices = @transform_0, window_bounds = array<i64: 4, 512>}, {transform_indices = @transform_1, window_bounds = array<i64: 4, 512>}]} {
    %c0 = arith.constant 0 : index
    %c0_0 = arith.constant 0 : index
    %0 = vector.load %arg1[%c0, %c0_0] : memref<4x512xf32, #tpu.memory_space<vmem>>, vector<4x512xf32>
    %1 = math.absf %0 : vector<4x512xf32>
    %cst = arith.constant 2.000000e-01 : f32
    %2 = vector.broadcast %cst : f32 to vector<4x512xf32>
    %3 = arith.mulf %1, %2 : vector<4x512xf32>
    %cst_1 = arith.constant 1.000000e+00 : f32
    %4 = vector.broadcast %cst_1 : f32 to vector<4x512xf32>
    %5 = arith.minimumf %3, %4 : vector<4x512xf32>
    %6 = arith.mulf %5, %5 : vector<4x512xf32>
    %cst_2 = arith.constant 7.96893786E-4 : f32
    %7 = vector.broadcast %cst_2 : f32 to vector<4x512xf32>
    %8 = arith.mulf %6, %7 : vector<4x512xf32>
    %cst_3 = arith.constant -0.0126778232 : f32
    %9 = vector.broadcast %cst_3 : f32 to vector<4x512xf32>
    %10 = arith.addf %8, %9 : vector<4x512xf32>
    %11 = arith.mulf %10, %6 : vector<4x512xf32>
    %cst_4 = arith.constant 0.117510982 : f32
    %12 = vector.broadcast %cst_4 : f32 to vector<4x512xf32>
    %13 = arith.addf %11, %12 : vector<4x512xf32>
    %14 = arith.mulf %13, %6 : vector<4x512xf32>
    %cst_5 = arith.constant -0.667575776 : f32
    %15 = vector.broadcast %cst_5 : f32 to vector<4x512xf32>
    %16 = arith.addf %14, %15 : vector<4x512xf32>
    %17 = arith.mulf %16, %6 : vector<4x512xf32>
    %cst_6 = arith.constant 2.02934623 : f32
    %18 = vector.broadcast %cst_6 : f32 to vector<4x512xf32>
    %19 = arith.addf %17, %18 : vector<4x512xf32>
    %20 = arith.mulf %19, %6 : vector<4x512xf32>
    %cst_7 = arith.constant -2.46740031 : f32
    %21 = vector.broadcast %cst_7 : f32 to vector<4x512xf32>
    %22 = arith.addf %20, %21 : vector<4x512xf32>
    %23 = arith.mulf %22, %6 : vector<4x512xf32>
    %cst_8 = arith.constant 1.000000e+00 : f32
    %24 = vector.broadcast %cst_8 : f32 to vector<4x512xf32>
    %25 = arith.addf %23, %24 : vector<4x512xf32>
    %cst_9 = arith.constant 5.000000e+00 : f32
    %26 = vector.broadcast %cst_9 : f32 to vector<4x512xf32>
    %27 = arith.cmpf oge, %0, %26 : vector<4x512xf32>
    %cst_10 = arith.constant 0.000000e+00 : f32
    %28 = vector.broadcast %cst_10 : f32 to vector<4x512xf32>
    %29 = arith.select %27, %28, %25 : vector<4x512xi1>, vector<4x512xf32>
    %c0_11 = arith.constant 0 : index
    %c0_12 = arith.constant 0 : index
    %30 = vector.load %arg2[%c0_11, %c0_12] : memref<4x512xf32, #tpu.memory_space<vmem>>, vector<4x512xf32>
    tpu.vector_store %arg2[%c0_11, %c0_12], %29 {strides = array<i32>} : memref<4x512xf32, #tpu.memory_space<vmem>>, vector<4x512xf32>,
    return
  }
  func.func @transform_0(%arg0: i32) -> (i32, i32) {
    %c0_i32 = arith.constant 0 : i32
    %c0_i32_0 = arith.constant 0 : i32
    return %arg0, %c0_i32 : i32, i32
  }
  func.func @transform_1(%arg0: i32) -> (i32, i32) {
    %c0_i32 = arith.constant 0 : i32
    %c0_i32_0 = arith.constant 0 : i32
    return %arg0, %c0_i32 : i32, i32
  }
}

</mosaic_0001>

<llo_original>
// kernel: tpu_custom_call.1
$region0: #{tpu_custom_call.1}
  #allocation0 [shape = 'u32[]', space=smem, size = 0x4, offset = 0x4, fixed_abs, tag = 'smem constant byte address 0x4 - core index']
  #allocation1 [shape = 'u32[144,128]{1,0:T(1,128)}', space=vmem, size = 0x12000, scoped, tag = 'internal scratch']
  %s0 = inlined_call_operand.hbm [shape: f32[4,512], index: 0, kind: input, shape index: {}]
  %s1 = inlined_call_operand.hbm [shape: f32[4,512], index: 1, kind: output, shape index: {}]
  %s2 = sld [smem:[#allocation0]]
  $region18: #{tpu_custom_call.1} parent=0
    _
  %s4 = ssub.s32 1, %s2
  %s5 = scalar_select 0, %s4, %s2
  $region1: #{tpu_custom_call.1} parent=0
    #allocation2 [shape = 'u8[8192]{0}', space=vmem, size = 0x2000, scoped, tag = 'input window, operand 0, single buffered']
    #allocation3 [shape = 's32[1]{0}', space=sflag, size = 0x4, scoped, tag = 'scoped memory for tpu_custom_call.1']
    #allocation4 [shape = 's32[1]{0}', space=sflag, size = 0x4, scoped, tag = 'scoped memory for tpu_custom_call.1']
    #allocation5 [shape = 'u8[8192]{0}', space=vmem, size = 0x2000, scoped, tag = 'output window, operand 0, single buffered']
    %6 = vsyncpa [#allocation3], 0
    %7 = vsyncpa [#allocation4], 0
    // Predicated region
    $region2: #{tpu_custom_call.1} parent=1 // pred_check
      _
    $region3: #{tpu_custom_call.1} parent=1 // pred_check_branch
      %9 = sbr.rel (0) target = $region5
    $region4: #{tpu_custom_call.1} parent=1 // pred_region
      %s11 = ssub.s32 256, 256
      %12 = vsyncadd [#allocation3], %s11
      %s14 = sshll.u32 [#allocation2], 4
      %s15 = int_to_ptr.vmem [resolvable:$true] %s14
      %17 = dma.hbm_to_vmem [thread:$0]  %s0, 256, %s15, [#allocation3]
    $region5: #{tpu_custom_call.1} parent=1 // pred_fallthru
      _
    // Predicated region
    $region6: #{tpu_custom_call.1} parent=1 // pred_check
      _
    $region7: #{tpu_custom_call.1} parent=1 // pred_check_branch
      %19 = sbr.rel (0) target = $region9
    $region8: #{tpu_custom_call.1} parent=1 // pred_region
      %20 = dma.done [#allocation3], 256
    $region9: #{tpu_custom_call.1} parent=1 // pred_fallthru
      _
    %v21 = vld [vmem:[#allocation2] sm:$0xff]
    %v22 = vld [vmem:[#allocation2 + $0x8] sm:$0xff]
    %v23 = vand.u32 2147483647, %v21
    %v24 = vand.u32 2147483647, %v22
    %v25 = vmul.f32 %v23, 0.2
    %v26 = vmul.f32 %v24, 0.2
    %v27 = vmin.f32 %v25, 1.0
    %v28 = vmin.f32 %v26, 1.0
    %v29 = vmul.f32 %v27, %v27
    %v30 = vmul.f32 %v28, %v28
    %v31 = vmul.f32 %v29, 0.0007968938
    %v32 = vmul.f32 %v30, 0.0007968938
    %v33 = vadd.f32 %v31, -0.012677823
    %v34 = vadd.f32 %v32, -0.012677823
    %v35 = vmul.f32 %v33, %v29
    %v36 = vmul.f32 %v34, %v30
    %v37 = vadd.f32 %v35, 0.11751098
    %v38 = vadd.f32 %v36, 0.11751098
    %v39 = vmul.f32 %v37, %v29
    %v40 = vmul.f32 %v38, %v30
    %v41 = vadd.f32 %v39, -0.6675758
    %v42 = vadd.f32 %v40, -0.6675758
    %v43 = vmul.f32 %v41, %v29
    %v44 = vmul.f32 %v42, %v30
    %v45 = vadd.f32 %v43, 2.0293462
    %v46 = vadd.f32 %v44, 2.0293462
    %v47 = vmul.f32 %v45, %v29
    %v48 = vmul.f32 %v46, %v30
    %v49 = vadd.f32 %v47, -2.4674003
    %v50 = vadd.f32 %v48, -2.4674003
    %v51 = vmul.f32 %v49, %v29
    %v52 = vmul.f32 %v50, %v30
    %v53 = vadd.f32 %v51, 1.0
    %v54 = vadd.f32 %v52, 1.0
    %vm55 = vcmp.ge.f32.partialorder %v21, 5.0
    %vm56 = vcmp.ge.f32.partialorder %v22, 5.0
    %v57 = vsel %vm55, 0.0, %v53
    %v58 = vsel %vm56, 0.0, %v54
    %59 = vst [vmem:[#allocation5] sm:$0xff] %v57
    %60 = vst [vmem:[#allocation5 + $0x8] sm:$0xff] %v58
    // Predicated region
    $region10: #{tpu_custom_call.1} parent=1 // pred_check
      _
    $region11: #{tpu_custom_call.1} parent=1 // pred_check_branch
      %62 = sbr.rel (0) target = $region13
    $region12: #{tpu_custom_call.1} parent=1 // pred_region
      %s64 = ssub.s32 256, 256
      %65 = vsyncadd [#allocation4], %s64
      %s67 = sshll.u32 [#allocation5], 4
      %s68 = int_to_ptr.vmem [resolvable:$true] %s67
      %70 = dma.vmem_to_hbm [thread:$0]  %s68, 256, %s1, [#allocation4]
    $region13: #{tpu_custom_call.1} parent=1 // pred_fallthru
      _
    // Predicated region
    $region14: #{tpu_custom_call.1} parent=1 // pred_check
      _
    $region15: #{tpu_custom_call.1} parent=1 // pred_check_branch
      %72 = sbr.rel (0) target = $region17
    $region16: #{tpu_custom_call.1} parent=1 // pred_region
      %73 = dma.done [#allocation4], 256
    $region17: #{tpu_custom_call.1} parent=1 // pred_fallthru
      _
    %74 = vsyncpa [#allocation3], 1
    %75 = vsyncpa [#allocation4], 1

</llo_original>
